<compile_context>
chip_gen: v7x
topology: tpu7x:2x2x1
jax: 0.10.0
libtpu: 0.0.40
codegen_flags: <defaults>
</compile_context>

<pallas_src>
import functools
import numpy as np
import jax
import jax.numpy as jnp
from jax import lax
from jax.experimental import pallas as pl
from jax.experimental.pallas import tpu as pltpu

C_LIGHT = 3e8
_EPS = 1e-12  # F.normalize default eps (MaxNorm calls F.normalize(p=inf))


def _cdiv(a, b):
    return -(-a // b)


def _round_up(a, m):
    return _cdiv(a, m) * m


def _vmem_capacity_bytes():
    """Physical per-TensorCore VMEM; conservative fallback if query fails."""
    try:
        return int(pltpu.get_tpu_info().vmem_capacity_bytes)
    except Exception:
        return 64 << 20  # v7x-sized fallback: safe everywhere


# ------------------------------ activations -------------------------------- #

_ACTIVATIONS = {
    'linear': None,  # identity, handled as a no-op inside the kernels
    'relu': lambda x: jnp.maximum(x, 0.0),
    'leaky_relu': lambda x: jnp.where(x >= 0, x, 0.2 * x),
    'exp': jnp.exp,
    'sigmoid': jax.nn.sigmoid,
    'tanh': jnp.tanh,
    'softplus': lambda x: jnp.log(1.0 + jnp.exp(x - 1.0)),
}


# ----------------------------- Pallas kernels ------------------------------ #

def _maxnorm_rows_kernel(x_ref, o_ref, *, actv_fn):
    """Single-pass: whole rows resident. Block = (TILE_BC, ROW)."""
    x = x_ref[...].astype(jnp.float32)
    if actv_fn is not None:
        x = actv_fn(x)
    m = jnp.max(jnp.abs(x), axis=-1, keepdims=True)          # per-row inf-norm
    inv = 1.0 / jnp.maximum(m, jnp.float32(_EPS))             # exact recip, per row only
    o_ref[...] = (x * inv).astype(o_ref.dtype)                # full-rate VALU multiply


def _rowmax_kernel(x_ref, m_ref, acc_ref, *, tile_col, row_len, actv_fn):
    """Two-pass / pass 1: tiled max(|actv(x)|) reduction along the row."""
    j = pl.program_id(1)

    @pl.when(j == 0)
    def _init():
        acc_ref[...] = jnp.zeros_like(acc_ref)

    x = x_ref[...].astype(jnp.float32)
    if actv_fn is not None:
        x = actv_fn(x)
    a = jnp.abs(x)
    if row_len % tile_col != 0:
        # mask out-of-bounds (garbage) tail columns of the last column block
        col = j * tile_col + lax.broadcasted_iota(jnp.int32, a.shape, 1)
        a = jnp.where(col < row_len, a, 0.0)
    acc_ref[...] = jnp.maximum(acc_ref[...], jnp.max(a, axis=-1, keepdims=True))

    @pl.when(j == pl.num_programs(1) - 1)
    def _done():
        m_ref[...] = acc_ref[...]


def _rescale_kernel(x_ref, m_ref, o_ref, *, actv_fn):
    """Two-pass / pass 2: tiled rescale by per-row reciprocal."""
    x = x_ref[...].astype(jnp.float32)
    if actv_fn is not None:
        x = actv_fn(x)
    inv = 1.0 / jnp.maximum(m_ref[...], jnp.float32(_EPS))
    o_ref[...] = (x * inv).astype(o_ref.dtype)


# ----------------------------- tiling planning ----------------------------- #

def _plan_single_pass(n_rows, row_bytes, vmem_bytes, multi_tc):
    """Rows per grid step for the single-pass kernel, or None -> use two-pass."""
    # largest block such that 2 in-bufs + 2 out-bufs + headroom fit ~75% of VMEM
    max_block = max(1 << 20, (vmem_bytes * 3 // 4 - (4 << 20)) // 4)
    if 8 * row_bytes > max_block:
        return None  # a single 8-row block would not fit -> two-pass fallback
    # preferred block: 8-16 MiB on 128 MiB-VMEM chips, ~8 MiB on v7x
    target = min(max_block, max(4 << 20, min(16 << 20, vmem_bytes // 8)))
    max_tile = max(8, (target // row_bytes) // 8 * 8)
    max_tile = min(max_tile, _round_up(n_rows, 8))
    steps = _cdiv(n_rows, max_tile)
    if multi_tc and n_rows > 8:
        # v7x: even number of ~equal steps so both TensorCores stay busy
        steps = max(2, steps + (steps % 2))
        tile = min(max_tile, max(8, _round_up(_cdiv(n_rows, steps), 8)))
    else:
        tile = max_tile
    return tile


# ------------------------------ entry points -------------------------------- #

def _max_norm_single_pass(xr, n, row, tile, vmem_bytes, actv_fn):
    itemsize = xr.dtype.itemsize
    block_bytes = tile * row * itemsize
    vmem_limit = int(min(max(32 << 20, 4 * block_bytes + (4 << 20)),
                         vmem_bytes * 3 // 4))
    grid = (_cdiv(n, tile),)
    return pl.pallas_call(
        functools.partial(_maxnorm_rows_kernel, actv_fn=actv_fn),
        out_shape=jax.ShapeDtypeStruct((n, row), xr.dtype),
        grid=grid,
        in_specs=[pl.BlockSpec((tile, row), lambda i: (i, 0))],
        out_specs=pl.BlockSpec((tile, row), lambda i: (i, 0)),
        compiler_params=pltpu.CompilerParams(
            dimension_semantics=("parallel",),
            vmem_limit_bytes=vmem_limit,
        ),
        cost_estimate=pl.CostEstimate(
            flops=2 * n * row,
            transcendentals=0,
            bytes_accessed=2 * n * row * itemsize,
        ),
    )(xr)


def _max_norm_two_pass(xr, n, row, vmem_bytes, actv_fn, block_bytes_cap=None):
    itemsize = xr.dtype.itemsize
    tile_bc = 8
    # 2 passes, each keeps ~3 live blocks (+ double buffering); budget per block
    max_block = max(1 << 20, (vmem_bytes * 3 // 4 - (4 << 20)) // 6)
    target = min(max_block, vmem_bytes // 8)
    if block_bytes_cap is not None:
        target = min(target, block_bytes_cap)
    tile_col = max(128, (target // (tile_bc * itemsize)) // 128 * 128)
    tile_col = min(tile_col, _round_up(row, 128))

    grid = (_cdiv(n, tile_bc), _cdiv(row, tile_col))
    block_bytes = tile_bc * tile_col * itemsize
    vmem_limit = int(min(max(32 << 20, 6 * block_bytes + (4 << 20)),
                         vmem_bytes * 3 // 4))

    rowmax = pl.pallas_call(
        functools.partial(_rowmax_kernel, tile_col=tile_col, row_len=row,
                          actv_fn=actv_fn),
        out_shape=jax.ShapeDtypeStruct((n, 1), jnp.float32),
        grid=grid,
        in_specs=[pl.BlockSpec((tile_bc, tile_col), lambda i, j: (i, j))],
        out_specs=pl.BlockSpec((tile_bc, 1), lambda i, j: (i, 0)),
        scratch_shapes=[pltpu.VMEM((tile_bc, 1), jnp.float32)],
        compiler_params=pltpu.CompilerParams(
            dimension_semantics=("parallel", "arbitrary"),
            vmem_limit_bytes=vmem_limit,
        ),
    )(xr)

    out = pl.pallas_call(
        functools.partial(_rescale_kernel, actv_fn=actv_fn),
        out_shape=jax.ShapeDtypeStruct((n, row), xr.dtype),
        grid=grid,
        in_specs=[pl.BlockSpec((tile_bc, tile_col), lambda i, j: (i, j)),
                  pl.BlockSpec((tile_bc, 1), lambda i, j: (i, 0))],
        out_specs=pl.BlockSpec((tile_bc, tile_col), lambda i, j: (i, j)),
        compiler_params=pltpu.CompilerParams(
            dimension_semantics=("parallel", "parallel"),
            vmem_limit_bytes=vmem_limit,
        ),
    )(xr, rowmax)
    return out


def max_norm_pallas(x, *, per_channel=True, actv_fn=None,
                    force_two_pass=False, block_bytes_cap=None):
    """actv(x) then MaxNorm on a (B, C, D, H, W) float tensor."""
    assert x.ndim == 5, 'input should be a 5D tensor, got {:d}D'.format(x.ndim)
    assert jnp.issubdtype(x.dtype, jnp.floating), 'kernel expects a float tensor'
    B, C, D, H, W = x.shape
    if per_channel:
        n, row = B * C, D * H * W
    else:
        n, row = B, C * D * H * W
    xr = x.reshape(n, row)

    vmem_bytes = _vmem_capacity_bytes()
    multi_tc = vmem_bytes <= (64 << 20)  # v7x signature: 64 MiB VMEM, 2 TCs
    row_bytes = row * x.dtype.itemsize

    tile = None if force_two_pass else _plan_single_pass(
        n, row_bytes, vmem_bytes, multi_tc)
    if tile is not None:
        out = _max_norm_single_pass(xr, n, row, tile, vmem_bytes, actv_fn)
    else:
        out = _max_norm_two_pass(xr, n, row, vmem_bytes, actv_fn,
                                 block_bytes_cap=block_bytes_cap)
    return out.reshape(x.shape)


# --------------------------- RSDBase (JAX port) ----------------------------- #

def _gaussian_window(n, sigma):
    # scipy.signal.gaussian equivalent
    idx = np.arange(n) - (n - 1) / 2.0
    return np.exp(-0.5 * (idx / sigma) ** 2)


class RSDBaseJAX:
    """Rayleigh-Sommerfeld diffraction kernel (buffer setup + post-processing)."""

    def __init__(self, t=64, d=8, h=16, w=16, in_plane=4, wall_size=2,
                 bin_len=0.02, zmin=0, zmax=2, scale_coef=1, n_cycles=4,
                 ratio=0.1, actv='linear', norm='max', per_channel=True,
                 efficient=False):
        assert t % 2 == 0, 'time dimension must be even'
        self.t, self.d, self.h, self.w = t, d, h, w
        self.in_plane = self.out_plane = in_plane
        self.wall_size = wall_size
        self.bin_len = bin_len
        self.n_cycles = n_cycles
        self.actv_name = actv
        self.norm_name = norm
        self.per_channel = per_channel

        bin_resolution = bin_len / C_LIGHT
        sampling_freq = 1.0 / bin_resolution
        wall_spacing = wall_size / h
        lambda_limit = 2 * wall_spacing
        wavelength = scale_coef * lambda_limit

        wave = self._define_wave(wavelength)
        fwave = np.abs(np.fft.fft(wave) / t)[:len(wave) // 2 + 1]
        coef_ratio = fwave / np.max(fwave)
        freq_idx = np.where(coef_ratio > ratio)[0]
        freqs = sampling_freq * freq_idx / t
        omegas = 2 * np.pi * freqs
        coefs = fwave[freq_idx]

        zdim = np.linspace(zmin, zmax, d + 1)
        zdim = (zdim[:-1] + zdim[1:]) / 2
        rsd, _ = self._define_rsd(zdim, omegas)
        if not efficient:
            rsd = np.pad(rsd, ((0, 0), (0, 0), (0, h), (0, w)))
        frsd = np.fft.fft2(rsd)
        omegas_r = omegas.reshape(-1, 1, 1, 1)
        tgrid = (zdim / C_LIGHT).reshape(1, -1, 1, 1)
        phase = np.exp(1j * omegas_r * tgrid)

        # deterministic buffers (registered non-persistent in the reference)
        self.freq_idx = jnp.asarray(freq_idx, dtype=jnp.int32)
        self.coefs = jnp.asarray(coefs.astype(np.float32)).reshape(-1, 1, 1)
        self.frsd = jnp.asarray(frsd.astype(np.complex64))
        self.phase = jnp.asarray(phase.astype(np.complex64))

    def _define_wave(self, wavelength):
        samples = round(self.n_cycles * wavelength / self.bin_len)
        n_cycles = samples * self.bin_len / wavelength
        idx = np.arange(samples) + 1
        sinusoid = np.exp(1j * 2 * np.pi * n_cycles * idx / samples)
        win = _gaussian_window(samples, (samples - 1) / 2 * 0.3)
        wave = sinusoid * win
        if len(wave) < self.t:
            wave = np.pad(wave, (0, self.t - len(wave)))
        return wave

    def _define_rsd(self, zdim, omegas):
        width = self.wall_size / 2
        ydim = np.linspace(width, -width, self.h + 1)
        xdim = np.linspace(-width, width, self.w + 1)
        ydim = (ydim[:-1] + ydim[1:]) / 2
        xdim = (xdim[:-1] + xdim[1:]) / 2
        zgrid, ygrid, xgrid = np.meshgrid(zdim, ydim, xdim, indexing='ij')
        dgrid = np.sqrt(xgrid ** 2 + ygrid ** 2 + zgrid ** 2)
        tgrid = zgrid / C_LIGHT
        dgrid = dgrid.reshape(1, len(zdim), self.h, self.w)
        omegas = omegas.reshape(-1, 1, 1, 1)
        rsd = np.exp(1j * omegas / C_LIGHT * dgrid) / dgrid
        return rsd, tgrid

    def postprocess(self, x):
        """actv(x) then MaxNorm (the concretely-defined RSDBase compute path)."""
        actv_fn = _ACTIVATIONS[self.actv_name]
        if self.norm_name == 'max':
            return max_norm_pallas(x, per_channel=self.per_channel,
                                   actv_fn=actv_fn)
        elif self.norm_name == 'none':
            return x if actv_fn is None else actv_fn(x)
        else:
            raise NotImplementedError(
                'invalid normalization function: {:s}'.format(self.norm_name))

    def forward(self, x, sqrt=True):
        # TODO(synk): RSDBase.forward raises NotImplementedError in the
        # reference (abstract base); the RSD propagation itself is defined
        # only in subclasses, so it is not reproduced here.
        raise NotImplementedError('RSD forward pass not implemented')


# ------------------------------- reference ---------------------------------- #

def _max_norm_ref(x, eps=_EPS):
    m = jnp.max(jnp.abs(x), axis=(-3, -2, -1), keepdims=True)
    return x / jnp.maximum(m, eps)


if __name__ == "__main__":
    key = jax.random.PRNGKey(0)

    # 1) main path: single-pass kernel, shapes matching the module's (d, h, w)
    B, C, D, H, W = 2, 4, 8, 16, 16
    k1, k2, k3 = jax.random.split(key, 3)
    x = jax.random.normal(k1, (B, C, D, H, W), dtype=jnp.float32) * 3.0
    mod = RSDBaseJAX(t=64, d=D, h=H, w=W, in_plane=C)
    out = jax.block_until_ready(mod.postprocess(x))
    ref = _max_norm_ref(x)
    assert out.shape == x.shape
    assert np.allclose(np.asarray(out), np.asarray(ref), atol=1e-6, rtol=1e-6)

    # 2) partial last row-block (B*C not a multiple of the tile): no pad/slice
    x2 = jax.random.normal(k2, (3, 3, 8, 16, 16), dtype=jnp.float32) * 2.0
    out2 = jax.block_until_ready(max_norm_pallas(x2))
    ref2 = _max_norm_ref(x2)
    assert np.allclose(np.asarray(out2), np.asarray(ref2), atol=1e-6, rtol=1e-6)

    # 3) two-pass (large-row fallback) path, forced on a small shape with a
    #    non-128-multiple row length to exercise the column masking + accumulator
    x3 = jax.random.normal(k3, (2, 4, 7, 10, 10), dtype=jnp.float32) * 5.0
    out3 = jax.block_until_ready(
        max_norm_pallas(x3, force_two_pass=True, block_bytes_cap=8 * 128 * 4))
    ref3 = _max_norm_ref(x3)
    assert np.allclose(np.asarray(out3), np.asarray(ref3), atol=1e-6, rtol=1e-6)

    print("KERNEL_OK")
</pallas_src>

<mosaic_0001>
module attributes {stable_mosaic.version = 11 : i64} {
  func.func @_maxnorm_rows_kernel(%arg0: i32, %arg1: memref<8x2048xf32, #tpu.memory_space<vmem>>, %arg2: memref<8x2048xf32, #tpu.memory_space<vmem>>) attributes {dimension_semantics = [#tpu.dimension_semantics<parallel>], iteration_bounds = array<i64: 1>, scalar_prefetch = 0 : i64, scratch_operands = 0 : i64, tpu.core_type = #tpu.core_type<tc>, window_params = [{transform_indices = @transform_0, window_bounds = array<i64: 8, 2048>}, {transform_indices = @transform_1, window_bounds = array<i64: 8, 2048>}]} {
    %c0 = arith.constant 0 : index
    %c0_0 = arith.constant 0 : index
    %0 = vector.load %arg1[%c0, %c0_0] : memref<8x2048xf32, #tpu.memory_space<vmem>>, vector<8x2048xf32>
    %1 = math.absf %0 : vector<8x2048xf32>
    %cst = arith.constant dense<0xFF800000> : vector<8xf32>
    %2 = vector.multi_reduction <maximumf>, %1, %cst [1] : vector<8x2048xf32> to vector<8xf32>
    %3 = vector.shape_cast %2 : vector<8xf32> to vector<8x1xf32>
    %cst_1 = arith.constant 9.99999996E-13 : f32
    %4 = vector.broadcast %cst_1 : f32 to vector<8x1xf32>
    %5 = arith.maximumf %3, %4 : vector<8x1xf32>
    %cst_2 = arith.constant 1.000000e+00 : f32
    %6 = vector.broadcast %cst_2 : f32 to vector<8x1xf32>
    %7 = arith.divf %6, %5 : vector<8x1xf32>
    %8 = vector.broadcast %7 : vector<8x1xf32> to vector<8x2048xf32>
    %9 = arith.mulf %0, %8 : vector<8x2048xf32>
    %c0_3 = arith.constant 0 : index
    %c0_4 = arith.constant 0 : index
    %10 = vector.load %arg2[%c0_3, %c0_4] : memref<8x2048xf32, #tpu.memory_space<vmem>>, vector<8x2048xf32>
    tpu.vector_store %arg2[%c0_3, %c0_4], %9 {strides = array<i32>} : memref<8x2048xf32, #tpu.memory_space<vmem>>, vector<8x2048xf32>,
    return
  }
  func.func @transform_0(%arg0: i32) -> (i32, i32) {
    %c0_i32 = arith.constant 0 : i32
    %c0_i32_0 = arith.constant 0 : i32
    return %arg0, %c0_i32 : i32, i32
  }
  func.func @transform_1(%arg0: i32) -> (i32, i32) {
    %c0_i32 = arith.constant 0 : i32
    %c0_i32_0 = arith.constant 0 : i32
    return %arg0, %c0_i32 : i32, i32
  }
}

</mosaic_0001>

<llo_original>
// kernel: tpu_custom_call.1
$region0: #{tpu_custom_call.1}
  #allocation0 [shape = 'u32[]', space=smem, size = 0x4, offset = 0x4, fixed_abs, tag = 'smem constant byte address 0x4 - core index']
  #allocation1 [shape = 'u32[144,128]{1,0:T(1,128)}', space=vmem, size = 0x12000, scoped, tag = 'internal scratch']
  %s0 = inlined_call_operand.hbm [shape: f32[8,2048], index: 0, kind: input, shape index: {}]
  %s1 = inlined_call_operand.hbm [shape: f32[8,2048], index: 1, kind: output, shape index: {}]
  %s2 = sld [smem:[#allocation0]]
  $region18: #{tpu_custom_call.1} parent=0
    _
  %s4 = ssub.s32 1, %s2
  %s5 = scalar_select 0, %s4, %s2
  $region1: #{tpu_custom_call.1} parent=0
    #allocation2 [shape = 'u8[65536]{0}', space=vmem, size = 0x10000, scoped, tag = 'input window, operand 0, single buffered']
    #allocation3 [shape = 's32[1]{0}', space=sflag, size = 0x4, scoped, tag = 'scoped memory for tpu_custom_call.1']
    #allocation4 [shape = 's32[1]{0}', space=sflag, size = 0x4, scoped, tag = 'scoped memory for tpu_custom_call.1']
    #allocation5 [shape = 'u8[65536]{0}', space=vmem, size = 0x10000, scoped, tag = 'output window, operand 0, single buffered']
    %6 = vsyncpa [#allocation3], 0
    %7 = vsyncpa [#allocation4], 0
    // Predicated region
    $region2: #{tpu_custom_call.1} parent=1 // pred_check
      _
    $region3: #{tpu_custom_call.1} parent=1 // pred_check_branch
      %9 = sbr.rel (0) target = $region5
    $region4: #{tpu_custom_call.1} parent=1 // pred_region
      %s11 = ssub.s32 2048, 2048
      %12 = vsyncadd [#allocation3], %s11
      %s14 = sshll.u32 [#allocation2], 4
      %s15 = int_to_ptr.vmem [resolvable:$true] %s14
      %17 = dma.hbm_to_vmem [thread:$0]  %s0, 2048, %s15, [#allocation3]
    $region5: #{tpu_custom_call.1} parent=1 // pred_fallthru
      _
    // Predicated region
    $region6: #{tpu_custom_call.1} parent=1 // pred_check
      _
    $region7: #{tpu_custom_call.1} parent=1 // pred_check_branch
      %19 = sbr.rel (0) target = $region9
    $region8: #{tpu_custom_call.1} parent=1 // pred_region
      %20 = dma.done [#allocation3], 2048
    $region9: #{tpu_custom_call.1} parent=1 // pred_fallthru
      _
    %v21 = vld [vmem:[#allocation2] sm:$0xff]
    %v22 = vld [vmem:[#allocation2 + $0x8] sm:$0xff]
    %v23 = vld [vmem:[#allocation2 + $0x10] sm:$0xff]
    %v24 = vld [vmem:[#allocation2 + $0x18] sm:$0xff]
    %v25 = vld [vmem:[#allocation2 + $0x20] sm:$0xff]
    %v26 = vld [vmem:[#allocation2 + $0x28] sm:$0xff]
    %v27 = vld [vmem:[#allocation2 + $0x30] sm:$0xff]
    %v28 = vld [vmem:[#allocation2 + $0x38] sm:$0xff]
    %v29 = vld [vmem:[#allocation2 + $0x40] sm:$0xff]
    %v30 = vld [vmem:[#allocation2 + $0x48] sm:$0xff]
    %v31 = vld [vmem:[#allocation2 + $0x50] sm:$0xff]
    %v32 = vld [vmem:[#allocation2 + $0x58] sm:$0xff]
    %v33 = vld [vmem:[#allocation2 + $0x60] sm:$0xff]
    %v34 = vld [vmem:[#allocation2 + $0x68] sm:$0xff]
    %v35 = vld [vmem:[#allocation2 + $0x70] sm:$0xff]
    %v36 = vld [vmem:[#allocation2 + $0x78] sm:$0xff]
    %v37 = vand.u32 2147483647, %v21
    %v38 = vand.u32 2147483647, %v22
    %v39 = vand.u32 2147483647, %v23
    %v40 = vand.u32 2147483647, %v24
    %v41 = vand.u32 2147483647, %v25
    %v42 = vand.u32 2147483647, %v26
    %v43 = vand.u32 2147483647, %v27
    %v44 = vand.u32 2147483647, %v28
    %v45 = vand.u32 2147483647, %v29
    %v46 = vand.u32 2147483647, %v30
    %v47 = vand.u32 2147483647, %v31
    %v48 = vand.u32 2147483647, %v32
    %v49 = vand.u32 2147483647, %v33
    %v50 = vand.u32 2147483647, %v34
    %v51 = vand.u32 2147483647, %v35
    %v52 = vand.u32 2147483647, %v36
    %v53 = vmax.f32 %v37, %v41
    %v54 = vmax.f32 %v38, %v42
    %v55 = vmax.f32 %v39, %v43
    %v56 = vmax.f32 %v40, %v44
    %v57 = vmax.f32 %v53, %v45
    %v58 = vmax.f32 %v54, %v46
    %v59 = vmax.f32 %v55, %v47
    %v60 = vmax.f32 %v56, %v48
    %v61 = vmax.f32 %v57, %v49
    %v62 = vmax.f32 %v58, %v50
    %v63 = vmax.f32 %v59, %v51
    %v64 = vmax.f32 %v60, %v52
    %v65 = vmax.f32 %v61, %v62
    %v66 = vmax.f32 %v63, %v64
    %v67 = vmax.f32 %v65, %v66
    %68 = vmax.xlane.f32.xlu0 %v67
    %v69 = vpop.xlane.xlu0 %68
    %v70 = vmax.f32 %v69, 1e-12
    %v71 = vrcp.pop %v70
    %v72 = vmul.f32 1.0, %v71
    %v73 = vmul.f32 %v21, %v72
    %v74 = vmul.f32 %v22, %v72
    %v75 = vmul.f32 %v23, %v72
    %v76 = vmul.f32 %v24, %v72
    %v77 = vmul.f32 %v25, %v72
    %v78 = vmul.f32 %v26, %v72
    %v79 = vmul.f32 %v27, %v72
    %v80 = vmul.f32 %v28, %v72
    %v81 = vmul.f32 %v29, %v72
    %v82 = vmul.f32 %v30, %v72
    %v83 = vmul.f32 %v31, %v72
    %v84 = vmul.f32 %v32, %v72
    %v85 = vmul.f32 %v33, %v72
    %v86 = vmul.f32 %v34, %v72
    %v87 = vmul.f32 %v35, %v72
    %v88 = vmul.f32 %v36, %v72
    %89 = vst [vmem:[#allocation5] sm:$0xff] %v73
    %90 = vst [vmem:[#allocation5 + $0x8] sm:$0xff] %v74
    %91 = vst [vmem:[#allocation5 + $0x10] sm:$0xff] %v75
    %92 = vst [vmem:[#allocation5 + $0x18] sm:$0xff] %v76
    %93 = vst [vmem:[#allocation5 + $0x20] sm:$0xff] %v77
    %94 = vst [vmem:[#allocation5 + $0x28] sm:$0xff] %v78
    %95 = vst [vmem:[#allocation5 + $0x30] sm:$0xff] %v79
    %96 = vst [vmem:[#allocation5 + $0x38] sm:$0xff] %v80
    %97 = vst [vmem:[#allocation5 + $0x40] sm:$0xff] %v81
    %98 = vst [vmem:[#allocation5 + $0x48] sm:$0xff] %v82
    %99 = vst [vmem:[#allocation5 + $0x50] sm:$0xff] %v83
    %100 = vst [vmem:[#allocation5 + $0x58] sm:$0xff] %v84
    %101 = vst [vmem:[#allocation5 + $0x60] sm:$0xff] %v85
    %102 = vst [vmem:[#allocation5 + $0x68] sm:$0xff] %v86
    %103 = vst [vmem:[#allocation5 + $0x70] sm:$0xff] %v87
    %104 = vst [vmem:[#allocation5 + $0x78] sm:$0xff] %v88
    // Predicated region
    $region10: #{tpu_custom_call.1} parent=1 // pred_check
      _
    $region11: #{tpu_custom_call.1} parent=1 // pred_check_branch
      %106 = sbr.rel (0) target = $region13
    $region12: #{tpu_custom_call.1} parent=1 // pred_region
      %s108 = ssub.s32 2048, 2048
      %109 = vsyncadd [#allocation4], %s108
      %s111 = sshll.u32 [#allocation5], 4
      %s112 = int_to_ptr.vmem [resolvable:$true] %s111
      %114 = dma.vmem_to_hbm [thread:$0]  %s112, 2048, %s1, [#allocation4]
    $region13: #{tpu_custom_call.1} parent=1 // pred_fallthru
      _
    // Predicated region
    $region14: #{tpu_custom_call.1} parent=1 // pred_check
      _
    $region15: #{tpu_custom_call.1} parent=1 // pred_check_branch
      %116 = sbr.rel (0) target = $region17
    $region16: #{tpu_custom_call.1} parent=1 // pred_region
      %117 = dma.done [#allocation4], 2048
    $region17: #{tpu_custom_call.1} parent=1 // pred_fallthru
      _
    %118 = vsyncpa [#allocation3], 1
    %119 = vsyncpa [#allocation4], 1

</llo_original>
